<compile_context>
chip_gen: v7x
topology: tpu7x:2x2x1
jax: 0.10.0
libtpu: 0.0.40
codegen_flags: <defaults>
</compile_context>

<pallas_src>
import functools
import math

import jax
import jax.numpy as jnp
from jax.experimental import pallas as pl
from jax.experimental.pallas import tpu as pltpu


def _round_up(x: int, n: int) -> int:
    return ((x + n - 1) // n) * n


_TM_MAX = 2048                            # absolute row-tile cap
_TILE_VMEM_BUDGET = 14 * 1024 * 1024      # bytes: 2x in-tiles + 2x out-tiles + weight bufs
_WEIGHT_BYTES_CAP = 2 * 1024 * 1024       # keep the block-diag weight <= ~2 MiB


def _patch_embed_kernel(x_ref, w_ref, o_ref):
    # One MXU matmul per grid step: (tm, Kb) @ (Kb, Nb) -> (tm, Nb), f32 accumulation.
    o_ref[...] = jnp.dot(
        x_ref[...], w_ref[...], preferred_element_type=jnp.float32
    ).astype(o_ref.dtype)


def _fold_factor(P: int, H: int, itemsize: int) -> int:
    """Number of patches folded per matmul row.

    Picks G so the output last dim (G*H) is >= 128 lanes (no masked vst) and, when the
    redundant block-diag FLOPs stay cheap, the contraction dim (G*P) is a multiple of 128.
    """
    g_out = max(1, -(-128 // H))                 # output lane-dense (G*H >= 128)
    g_k = 128 // math.gcd(P, 128)                # smallest G with (G*P) % 128 == 0
    g_target = -(-g_out // g_k) * g_k            # >= g_out and a multiple of g_k
    # Redundancy cap: the block-diag GEMM does G x the useful FLOPs.  Cap at 8 for 4-byte
    # dtypes so v5e (slow f32 MXU, ~0.82 TB/s HBM) stays HBM-bound; 16 otherwise.
    g_flops = 8 if itemsize >= 4 else 16
    # Keep the (G*P, G*H) weight block small.
    g_wmem = max(1, int(math.isqrt(_WEIGHT_BYTES_CAP // max(1, P * H * itemsize))))
    return max(g_out, min(g_target, g_flops, g_wmem))


@functools.partial(jax.jit, static_argnames=("input_token_len",))
def timer_patch_embedding(hidden_state, weight, *, input_token_len):
    """JAX/Pallas equivalent of TimerPatchEmbedding.forward.

    hidden_state: [..., seq_len]  with seq_len % input_token_len == 0
    weight:       [hidden_size, input_token_len]  (nn.Linear weight convention)
    returns:      [..., num_patches, hidden_size]
    """
    *lead, seq_len = hidden_state.shape
    P = int(input_token_len)
    assert seq_len % P == 0, "seq_len must be divisible by input_token_len"
    num_patches = seq_len // P
    H = weight.shape[0]
    assert weight.shape[1] == P, "weight must be [hidden_size, input_token_len]"

    dtype = hidden_state.dtype
    itemsize = jnp.dtype(dtype).itemsize
    w_t = weight.astype(dtype).T  # [P, H]; tiny one-time transpose in glue

    # ---- unfold(step == size) is a pure reshape; flatten leading dims into patch rows ----
    m = num_patches
    for d in lead:
        m *= d
    x2d = hidden_state.reshape(m, P)  # [m, P] (contiguous reshape, no HBM round-trip)

    # ---- lane-dense folding: pack G patches per row, block-diagonal weight ----
    G = _fold_factor(P, H, itemsize)
    Kb, Nb = G * P, G * H
    if G == 1:
        w_blk = w_t
    else:
        # block-diag: [p_0 .. p_{G-1}] @ Wb == concat(p_0 @ W.T, ..., p_{G-1} @ W.T)
        w_blk = jnp.kron(jnp.eye(G, dtype=dtype), w_t)  # [G*P, G*H]

    rows = -(-m // G)                 # ceil(m / G)
    pad_patches = rows * G - m        # <= G-1 remainder rows, only when m % G != 0
    if pad_patches:
        x2d = jnp.pad(x2d, ((0, pad_patches), (0, 0)))
    x_folded = x2d.reshape(rows, Kb)  # contiguous reshape

    # ---- row tile: VMEM-budget derived, >= ~4 grid steps, sublane (8) aligned ----
    w_bufs_bytes = 2 * Kb * Nb * itemsize        # conservative (weight is single-buffered)
    per_row_bytes = 2 * (Kb + Nb) * itemsize     # double-buffered in + out tiles
    tm_budget = max(8, ((_TILE_VMEM_BUDGET - w_bufs_bytes) // per_row_bytes) // 8 * 8)
    tm_steps = max(512, _round_up(-(-rows // 4), 8))   # >= ~4 steps, but >= 512-row tiles
    tm = max(8, min(_TM_MAX, tm_budget, tm_steps, _round_up(rows, 8)))

    grid_steps = -(-rows // tm)       # Pallas masks the partial last block's stores

    cost = pl.CostEstimate(
        flops=2 * (grid_steps * tm) * Kb * Nb,   # the block-diag padded GEMM actually run
        transcendentals=0,
        bytes_accessed=itemsize * (rows * Kb + Kb * Nb + rows * Nb),
    )
    footprint = 2 * tm * (Kb + Nb) * itemsize + w_bufs_bytes
    vmem_limit = int(min(64 * 1024 * 1024, max(32 * 1024 * 1024, 2 * footprint)))

    out_folded = pl.pallas_call(
        _patch_embed_kernel,
        out_shape=jax.ShapeDtypeStruct((rows, Nb), dtype),   # exact rows: no pad/slice HBM pass
        grid_spec=pltpu.PrefetchScalarGridSpec(
            num_scalar_prefetch=0,
            grid=(grid_steps,),
            in_specs=[
                pl.BlockSpec((tm, Kb), lambda i: (i, 0)),
                # Constant index_map -> resident weight; single-buffered (never re-DMA'd).
                pl.BlockSpec((Kb, Nb), lambda i: (0, 0), pipeline_mode=pl.Buffered(1)),
            ],
            out_specs=pl.BlockSpec((tm, Nb), lambda i: (i, 0)),
        ),
        compiler_params=pltpu.CompilerParams(
            dimension_semantics=("parallel",),   # megacore-shardable on v7x
            vmem_limit_bytes=vmem_limit,
        ),
        cost_estimate=cost,
    )(x_folded, w_blk)

    # Unfold the lane-dense packing back into per-patch embeddings (contiguous reshape).
    out2d = out_folded.reshape(rows * G, H)
    if pad_patches:
        out2d = out2d[:m]             # only the remainder case pays this small slice
    return out2d.reshape(*lead, num_patches, H)


if __name__ == "__main__":
    # Small config consistent with the module:
    #   input_token_len (patch size) = 8, hidden_size = 32
    #   input time series: [batch=2, seq_len=64] -> output [2, 8, 32]
    batch = 2
    seq_len = 64
    input_token_len = 8
    hidden_size = 32

    key = jax.random.PRNGKey(0)
    k_x, k_w = jax.random.split(key)

    hidden_state = jax.random.normal(k_x, (batch, seq_len), dtype=jnp.float32)
    # nn.Linear(input_token_len, hidden_size, bias=False).weight -> [hidden_size, input_token_len]
    weight = jax.random.normal(k_w, (hidden_size, input_token_len), dtype=jnp.float32) * 0.02

    out = timer_patch_embedding(hidden_state, weight, input_token_len=input_token_len)
    out = jax.block_until_ready(out)

    # Reference check (plain JAX). Tolerances account for possible bf16-pass MXU precision
    # differences between the XLA reference dot and the in-kernel matmul.
    ref = hidden_state.reshape(batch, seq_len // input_token_len, input_token_len) @ weight.T
    assert out.shape == (batch, seq_len // input_token_len, hidden_size), out.shape
    assert jnp.allclose(out, ref, atol=2e-3, rtol=2e-2), "mismatch vs reference"

    print("KERNEL_OK")
</pallas_src>

<mosaic_0001>
module attributes {stable_mosaic.version = 11 : i64} {
  func.func @_patch_embed_kernel(%arg0: i32, %arg1: memref<8x64xf32, #tpu.memory_space<vmem>>, %arg2: memref<64x256xf32, #tpu.memory_space<vmem>>, %arg3: memref<8x256xf32, #tpu.memory_space<vmem>>) attributes {dimension_semantics = [#tpu.dimension_semantics<parallel>], iteration_bounds = array<i64: 1>, scalar_prefetch = 0 : i64, scratch_operands = 0 : i64, tpu.core_type = #tpu.core_type<tc>, window_params = [{transform_indices = @transform_0, window_bounds = array<i64: 8, 64>}, {pipeline_mode = #tpu.pipeline_mode<synchronous>, transform_indices = @transform_1, window_bounds = array<i64: 64, 256>}, {transform_indices = @transform_2, window_bounds = array<i64: 8, 256>}]} {
    %c0 = arith.constant 0 : index
    %c0_0 = arith.constant 0 : index
    %0 = vector.load %arg1[%c0, %c0_0] : memref<8x64xf32, #tpu.memory_space<vmem>>, vector<8x64xf32>
    %c0_1 = arith.constant 0 : index
    %c0_2 = arith.constant 0 : index
    %1 = vector.load %arg2[%c0_1, %c0_2] : memref<64x256xf32, #tpu.memory_space<vmem>>, vector<64x256xf32>
    %cst = arith.constant dense<0.000000e+00> : vector<8x256xf32>
    %2 = tpu.matmul %0, %1, %cst {dimension_numbers = #tpu.dot_dimension_numbers<[1], [0], [0], [1], [0, 0, 1, 1], [], []>} : vector<8x64xf32>, vector<64x256xf32>, vector<8x256xf32> -> vector<8x256xf32>
    %c0_3 = arith.constant 0 : index
    %c0_4 = arith.constant 0 : index
    %3 = vector.load %arg3[%c0_3, %c0_4] : memref<8x256xf32, #tpu.memory_space<vmem>>, vector<8x256xf32>
    tpu.vector_store %arg3[%c0_3, %c0_4], %2 {strides = array<i32>} : memref<8x256xf32, #tpu.memory_space<vmem>>, vector<8x256xf32>,
    return
  }
  func.func @transform_0(%arg0: i32) -> (i32, i32) {
    %c0_i32 = arith.constant 0 : i32
    %c0_i32_0 = arith.constant 0 : i32
    return %arg0, %c0_i32 : i32, i32
  }
  func.func @transform_1(%arg0: i32) -> (i32, i32) {
    %c0_i32 = arith.constant 0 : i32
    %c0_i32_0 = arith.constant 0 : i32
    %c0_i32_1 = arith.constant 0 : i32
    return %c0_i32, %c0_i32_0 : i32, i32
  }
  func.func @transform_2(%arg0: i32) -> (i32, i32) {
    %c0_i32 = arith.constant 0 : i32
    %c0_i32_0 = arith.constant 0 : i32
    return %arg0, %c0_i32 : i32, i32
  }
}

</mosaic_0001>

<llo_original>
// kernel: timer_patch_embedding.1
$region0: #{timer_patch_embedding.1}
  #allocation0 [shape = 'u32[]', space=smem, size = 0x4, offset = 0x4, fixed_abs, tag = 'smem constant byte address 0x4 - core index']
  #allocation1 [shape = 'u32[144,128]{1,0:T(1,128)}', space=vmem, size = 0x12000, scoped, tag = 'internal scratch']
  %s0 = inlined_call_operand.vmem [shape: f32[2,64], index: 0, kind: input, shape index: {}]
  %s1 = inlined_call_operand.vmem [shape: f32[64,256], index: 1, kind: input, shape index: {}]
  %s2 = inlined_call_operand.vmem [shape: f32[2,256], index: 2, kind: output, shape index: {}]
  %s3 = sld [smem:[#allocation0]]
  $region48: #{timer_patch_embedding.1} parent=0
    _
  %s5 = ssub.s32 1, %s3
  %s6 = scalar_select 0, %s5, %s3
  $region1: #{timer_patch_embedding.1} parent=0
    #allocation2 [shape = 'u8[8192]{0}', space=vmem, size = 0x2000, scoped, tag = 'output window, operand 0, single buffered']
    // Predicated region
    $region2: #{timer_patch_embedding.1} parent=1 // pred_check
      _
    $region3: #{timer_patch_embedding.1} parent=1 // pred_check_branch
      %8 = sbr.rel (0) target = $region5
    $region4: #{timer_patch_embedding.1} parent=1 // pred_region
      _
    $region5: #{timer_patch_embedding.1} parent=1 // pred_fallthru
      _
    // Predicated region
    $region6: #{timer_patch_embedding.1} parent=1 // pred_check
      _
    $region7: #{timer_patch_embedding.1} parent=1 // pred_check_branch
      %10 = sbr.rel (0) target = $region9
    $region8: #{timer_patch_embedding.1} parent=1 // pred_region
      _
    $region9: #{timer_patch_embedding.1} parent=1 // pred_fallthru
      _
    %v11 = vld [vmem:[%s0] sm:$0xff]
    %v12 = vld [vmem:[%s1] sm:$0xff]
    %v13 = vld [vmem:[%s1 + $0x8] sm:$0xff]
    %v14 = vld [vmem:[%s1 + $0x10] sm:$0xff]
    %v15 = vld [vmem:[%s1 + $0x18] sm:$0xff]
    %v16 = vld [vmem:[%s1 + $0x20] sm:$0xff]
    %v17 = vld [vmem:[%s1 + $0x28] sm:$0xff]
    %v18 = vld [vmem:[%s1 + $0x30] sm:$0xff]
    %v19 = vld [vmem:[%s1 + $0x38] sm:$0xff]
    %v20 = vld [vmem:[%s1 + $0x40] sm:$0xff]
    %v21 = vld [vmem:[%s1 + $0x48] sm:$0xff]
    %v22 = vld [vmem:[%s1 + $0x50] sm:$0xff]
    %v23 = vld [vmem:[%s1 + $0x58] sm:$0xff]
    %v24 = vld [vmem:[%s1 + $0x60] sm:$0xff]
    %v25 = vld [vmem:[%s1 + $0x68] sm:$0xff]
    %v26 = vld [vmem:[%s1 + $0x70] sm:$0xff]
    %v27 = vld [vmem:[%s1 + $0x78] sm:$0xff]
    %vm28 = vcmask 523264
    %v30 = vsel %vm28, %v11, 0
    %32 = vmatprep.subr.mxu0 %v13
    %33 = vmatpush1.msra.mxu0 %v12
    %34 = vmatprep.subr.mxu0 %v15
    %35 = vmatpush1.msra.mxu0 %v14
    %36 = vmatprep.subr.mxu0 %v17
    %37 = vmatpush1.msra.mxu0 %v16
    %38 = vmatprep.subr.mxu0 %v19
    %39 = vmatpush1.msra.mxu0 %v18
    %40 = vmatprep.subr.mxu0 %v21
    %41 = vmatpush1.msra.mxu0 %v20
    %42 = vmatprep.subr.mxu0 %v23
    %43 = vmatpush1.msra.mxu0 %v22
    %44 = vmatprep.subr.mxu0 %v25
    %45 = vmatpush1.msra.mxu0 %v24
    %46 = vmatprep.subr.mxu0 %v27
    %47 = vmatpush1.msra.mxu0 %v26
    %48 = vmatprep.subr.mxu0 0.0
    %49 = vmatpush1.msra.mxu0 0.0
    %50 = vmatprep.subr.mxu0 0.0
    %51 = vmatpush1.msra.mxu0 0.0
    %52 = vmatprep.subr.mxu0 0.0
    %53 = vmatpush1.msra.mxu0 0.0
    %54 = vmatprep.subr.mxu0 0.0
    %55 = vmatpush1.msra.mxu0 0.0
    %56 = vmatprep.subr.mxu0 0.0
    %57 = vmatpush1.msra.mxu0 0.0
    %58 = vmatprep.subr.mxu0 0.0
    %59 = vmatpush1.msra.mxu0 0.0
    %60 = vmatprep.subr.mxu0 0.0
    %61 = vmatpush1.msra.mxu0 0.0
    %62 = vmatprep.subr.mxu0 0.0
    %63 = vmatpush1.msra.mxu0 0.0
    %64 = vmatprep.subr.mxu0 0.0
    %65 = vmatpush1.msra.mxu0 0.0
    %66 = vmatprep.subr.mxu0 0.0
    %67 = vmatpush1.msra.mxu0 0.0
    %68 = vmatprep.subr.mxu0 0.0
    %69 = vmatpush1.msra.mxu0 0.0
    %70 = vmatprep.subr.mxu0 0.0
    %71 = vmatpush1.msra.mxu0 0.0
    %72 = vmatprep.subr.mxu0 0.0
    %73 = vmatpush1.msra.mxu0 0.0
    %74 = vmatprep.subr.mxu0 0.0
    %75 = vmatpush1.msra.mxu0 0.0
    %76 = vmatprep.subr.mxu0 0.0
    %77 = vmatpush1.msra.mxu0 0.0
    %78 = vmatprep.subr.mxu0 0.0
    %79 = vmatpush1.msra.mxu0 0.0
    %80 = vmatprep.subr.mxu0 0.0
    %81 = vmatpush1.msra.mxu0 0.0
    %82 = vmatprep.subr.mxu0 0.0
    %83 = vmatpush1.msra.mxu0 0.0
    %84 = vmatprep.subr.mxu0 0.0
    %85 = vmatpush1.msra.mxu0 0.0
    %86 = vmatprep.subr.mxu0 0.0
    %87 = vmatpush1.msra.mxu0 0.0
    %88 = vmatprep.subr.mxu0 0.0
    %89 = vmatpush1.msra.mxu0 0.0
    %90 = vmatprep.subr.mxu0 0.0
    %91 = vmatpush1.msra.mxu0 0.0
    %92 = vmatprep.subr.mxu0 0.0
    %93 = vmatpush1.msra.mxu0 0.0
    %94 = vmatprep.subr.mxu0 0.0
    %95 = vmatpush1.msra.mxu0 0.0
    %96 = vmatprep.mubr.f32.mxu0 0.0
    %97 = vmatmul.mubr.f32.gmra.mrb[0].mxu0 %v30
    %v98 = vpop.f32.mrb[0].mxu0
    %v99 = vadd.f32 0.0, %v98
    %v100 = vpop.f32.mrb[0].mxu0
    %v101 = vadd.f32 0.0, %v100
    %102 = vdwg.mxu0
    %v105 = vcombine.low %v99, %v101
    %v106 = vcombine.high %v99, %v101
    %v108 = vunpack.c.l.s4 1983009808
    %v109 = vunpack.c.0.s8 %v108
    %v110 = vlaneseq
    %v111 = vshrl.u32 %v110, 7
    %v112 = vsub.s32 %v109, %v111
    %v113 = vrot.slane %v105, %v112
    %v115 = vunpack.c.l.s4 1983009808
    %v116 = vunpack.c.0.s8 %v115
    %v117 = vlaneseq
    %v118 = vshrl.u32 %v117, 7
    %v119 = vsub.s32 %v116, %v118
    %v120 = vrot.slane %v106, %v119
    %v121 = vcombine.high %v113, %v113
    %v122 = vcombine.high %v120, %v120
    %127 = vst [vmem:[#allocation2] sm:$0xf] %v113
    %128 = vst [vmem:[#allocation2 + $0x4] sm:$0xf] %v121
    %129 = vst [vmem:[#allocation2 + $0x8] sm:$0xf] %v120
    %130 = vst [vmem:[#allocation2 + $0xc] sm:$0xf] %v122
    // Predicated region
    $region10: #{timer_patch_embedding.1} parent=1 // pred_check
      _
    $region11: #{timer_patch_embedding.1} parent=1 // pred_check_branch
      %132 = sbr.rel (0) target = $region13
    $region12: #{timer_patch_embedding.1} parent=1 // pred_region
      // Predicated region
      $region14: #{timer_patch_embedding.1} parent=12 // pred_check
        _
      $region15: #{timer_patch_embedding.1} parent=12 // pred_check_branch
        %134 = sbr.rel (0) target = $region17
      $region16: #{timer_patch_embedding.1} parent=12 // pred_region
        // Predicated region
        $region18: #{timer_patch_embedding.1} parent=16 // pred_check
          _
        $region19: #{timer_patch_embedding.1} parent=16 // pred_check_branch
          %136 = sbr.rel target = $region21
        $region20: #{timer_patch_embedding.1} parent=16 // pred_region
          // Predicated region
          $region33: #{timer_patch_embedding.1} parent=20 // pred_check
            _
          $region34: #{timer_patch_embedding.1} parent=20 // pred_check_branch
            %151 = sbr.rel (0) target = $region36
          $region35: #{timer_patch_embedding.1} parent=20 // pred_region
            loop: start=0, step=1, limit=1
            $region37: #{timer_patch_embedding.1} parent=35 // loop_pre_header
              _
            $region38: #{timer_patch_embedding.1} parent=35 // loop_header
              %s154 = sphi 0, %s158
              %p155 = scmp.ge.s32.totalorder %s154, 1
              %s159 = sphi [#allocation2], [#allocation2]
              %s160 = sphi %s2, %s2
            $region39: #{timer_patch_embedding.1} parent=35 // loop_header_branch
              %157 = sbr.rel (%p155) target = $region43
            $region40: #{timer_patch_embedding.1} parent=35 // loop_body
              %v161 = vld [vmem:[%s159] sm:$0xf]
              %162 = vst [vmem:[%s160] sm:$0xf] %v161
            $region41: #{timer_patch_embedding.1} parent=35 // loop_footer
              %s158 = sadd.s32 1, %s154
            $region42: #{timer_patch_embedding.1} parent=35 // loop_footer_branch
              %153 = sbr.rel target = $region38
            $region43: #{timer_patch_embedding.1} parent=35 // loop_exit
              _
          $region36: #{timer_patch_embedding.1} parent=20 // pred_fallthru
            _
        $region21: #{timer_patch_embedding.1} parent=16 // pred_fallthru
          _
        // Predicated region
        $region22: #{timer_patch_embedding.1} parent=16 // pred_check
          _
        $region23: #{timer_patch_embedding.1} parent=16 // pred_check_branch
          %138 = sbr.rel (0) target = $region25
        $region24: #{timer_patch_embedding.1} parent=16 // pred_region
          loop: start=0, step=1, limit=1
          $region26: #{timer_patch_embedding.1} parent=24 // loop_pre_header
            _
          $region27: #{timer_patch_embedding.1} parent=24 // loop_header
            %s141 = sphi 0, %s145
            %p142 = scmp.ge.s32.totalorder %s141, 1
            %s146 = sphi [#allocation2], [#allocation2]
            %s147 = sphi %s2, %s2
          $region28: #{timer_patch_embedding.1} parent=24 // loop_header_branch
            %144 = sbr.rel (%p142) target = $region32
          $region29: #{timer_patch_embedding.1} parent=24 // loop_body
            %v148 = vld [vmem:[%s146] sm:$0xf]
            %149 = vst [vmem:[%s147] sm:$0xf] %v148
          $region30: #{timer_patch_embedding.1} parent=24 // loop_footer
            %s145 = sadd.s32 1, %s141
          $region31: #{timer_patch_embedding.1} parent=24 // loop_footer_branch
            %140 = sbr.rel target = $region27
          $region32: #{timer_patch_embedding.1} parent=24 // loop_exit
            _
        $region25: #{timer_patch_embedding.1} parent=16 // pred_fallthru
          _
      $region17: #{timer_patch_embedding.1} parent=12 // pred_fallthru
        _
      %163 = vnop
    $region13: #{timer_patch_embedding.1} parent=1 // pred_fallthru
      _
    // Predicated region
    $region44: #{timer_patch_embedding.1} parent=1 // pred_check
      _
    $region45: #{timer_patch_embedding.1} parent=1 // pred_check_branch
      %165 = sbr.rel (0) target = $region47
    $region46: #{timer_patch_embedding.1} parent=1 // pred_region
      _
    $region47: #{timer_patch_embedding.1} parent=1 // pred_fallthru
      _

</llo_original>
